<compile_context>
chip_gen: v7x
topology: tpu7x:2x2x1
jax: 0.10.0
libtpu: 0.0.40
codegen_flags: <defaults>
</compile_context>

<pallas_src>
import functools

import jax
import jax.numpy as jnp
from jax.experimental import pallas as pl
from jax.experimental.pallas import tpu as pltpu


# Safe on all generations: well below v5e/v6e's 128 MiB and v7x's 64 MiB VMEM;
# above the small scoped defaults so larger seq/batch tiles are usable.
_VMEM_LIMIT = 48 * 1024 * 1024


def _round_up(x, m):
    return (x + m - 1) // m * m


# ---------------------------------------------------------------------------
# Dense projection kernel:  y = x @ w_t + b
# Used for (a) proj = target @ Wa^T and (b) combine = [cv, target] @ Wcd^T + b.
# Keeping these out of the attention kernel frees its VMEM budget and gives the
# MXU full-width M (batch rows) instead of per-seq-tile M=1 matvecs.
# ---------------------------------------------------------------------------
def _linear_kernel(x_ref, wt_ref, b_ref, o_ref):
    acc = jnp.dot(x_ref[...], wt_ref[...], preferred_element_type=jnp.float32)
    o_ref[...] = (acc + b_ref[...]).astype(o_ref.dtype)


def _linear(x, w_t, bias_row, out_dtype, tm_max=256):
    M, K = x.shape
    N = w_t.shape[1]
    tm = M if M <= tm_max else tm_max
    grid = (pl.cdiv(M, tm),)
    return pl.pallas_call(
        _linear_kernel,
        out_shape=jax.ShapeDtypeStruct((M, N), out_dtype),
        grid_spec=pltpu.PrefetchScalarGridSpec(
            num_scalar_prefetch=0,
            grid=grid,
            in_specs=[
                pl.BlockSpec((tm, K), lambda i: (i, 0)),
                pl.BlockSpec((K, N), lambda i: (0, 0)),   # weight, VMEM-resident
                pl.BlockSpec((1, N), lambda i: (0, 0)),   # bias row
            ],
            out_specs=pl.BlockSpec((tm, N), lambda i: (i, 0)),
        ),
        compiler_params=pltpu.CompilerParams(
            dimension_semantics=("parallel",),
            vmem_limit_bytes=_VMEM_LIMIT),
    )(x, w_t, bias_row)


# ---------------------------------------------------------------------------
# Attention core, fast path: whole sequence fits in one tile.
# Plain softmax, no scratch, no online-softmax machinery.
# ---------------------------------------------------------------------------
def _attn_single_kernel(ctx_ref, proj_ref, cv_ref, attn_ref):
    ctx = ctx_ref[...]                                        # (TB, S, Hp)
    scores = jnp.einsum('bqh,bsh->bqs', proj_ref[...], ctx,
                        preferred_element_type=jnp.float32)   # (TB, 1, S)
    m = jnp.max(scores, axis=-1, keepdims=True)
    p = jnp.exp(scores - m)
    l = jnp.sum(p, axis=-1, keepdims=True)
    attn = p / l                                              # exact normalization
    attn_ref[...] = attn.astype(attn_ref.dtype)
    cv = jnp.einsum('bqs,bsh->bqh', attn.astype(ctx.dtype), ctx,
                    preferred_element_type=jnp.float32)       # (TB, 1, Hp)
    cv_ref[...] = cv.astype(cv_ref.dtype)


# ---------------------------------------------------------------------------
# Attention core, streaming path: online softmax across seq tiles.
# Grid = (batch_tiles, seq_tiles); outputs are resident across the seq axis.
# ---------------------------------------------------------------------------
def _attn_stream_kernel(ctx_ref, proj_ref, cv_ref, attn_ref,
                        m_ref, l_ref, acc_ref, *, seq_len, ts):
    s_idx = pl.program_id(1)
    last = pl.num_programs(1) - 1

    @pl.when(s_idx == 0)
    def _():
        m_ref[...] = jnp.full_like(m_ref, -jnp.inf)
        l_ref[...] = jnp.zeros_like(l_ref)
        acc_ref[...] = jnp.zeros_like(acc_ref)

    ctx = ctx_ref[...]                                        # (TB, ts, Hp)

    # Ragged last tile: the HBM block may contain garbage rows beyond seq_len.
    # Zero them before they hit the MXU (avoids 0 * NaN pollution).
    # Note: only the *last* tile can be ragged, so tile 0 always has at least
    # one valid position and the running max never stays -inf.
    row_pos = s_idx * ts + jax.lax.broadcasted_iota(jnp.int32, (1, ts, 1), 1)
    ctx = jnp.where(row_pos < seq_len, ctx, jnp.zeros_like(ctx))

    scores = jnp.einsum('bqh,bsh->bqs', proj_ref[...], ctx,
                        preferred_element_type=jnp.float32)   # (TB, 1, ts)
    col_pos = s_idx * ts + jax.lax.broadcasted_iota(jnp.int32, (1, 1, ts), 2)
    scores = jnp.where(col_pos < seq_len, scores, -jnp.inf)

    # Online softmax statistics.
    m_prev = m_ref[...]                                       # (TB, 1, 1)
    m_new = jnp.maximum(m_prev, jnp.max(scores, axis=-1, keepdims=True))
    alpha = jnp.exp(m_prev - m_new)
    p = jnp.exp(scores - m_new)                               # (TB, 1, ts)
    l_ref[...] = alpha * l_ref[...] + jnp.sum(p, axis=-1, keepdims=True)
    acc_ref[...] = alpha * acc_ref[...] + jnp.einsum(
        'bqs,bsh->bqh', p.astype(ctx.dtype), ctx,
        preferred_element_type=jnp.float32)
    m_ref[...] = m_new

    # Deferred attention normalization: write the raw (masked) scores once per
    # tile; one exp/scale pass in the epilogue replaces the old O(S^2/ts)
    # per-tile full-row rescale.
    start = pl.multiple_of(s_idx * ts, ts)
    attn_ref[:, :, pl.ds(start, ts)] = scores

    @pl.when(s_idx == last)
    def _():
        inv_l = 1.0 / l_ref[...]                              # exact; once per batch tile
        cv_ref[...] = (acc_ref[...] * inv_l).astype(cv_ref.dtype)
        attn_ref[...] = (jnp.exp(attn_ref[...] - m_ref[...]) * inv_l
                         ).astype(attn_ref.dtype)


# ---------------------------------------------------------------------------
# Wrapper
# ---------------------------------------------------------------------------
def attention_forward(context, target, wa_weight, cd_weight, cd_bias,
                      *, ts_max=512, tb_max=8, compute_dtype=jnp.bfloat16):
    """Pallas forward of Attention(score_function='general').

    context: (B, S, H); target: (B, H)
    wa_weight: (H, H)   -- nn.Linear(H, H, bias=False).weight
    cd_weight: (H, 2H)  -- nn.Linear(2H, H).weight
    cd_bias:   (H,)     -- nn.Linear(2H, H).bias
    Returns (combine (B, H) f32, attention_distribution (B, S) f32).
    """
    B, S, H = context.shape
    f32 = jnp.float32

    # Lane-dense hidden dim; no copy when H is already a multiple of 128.
    # The sequence dim is never padded: the ragged tile is masked in-kernel.
    Hp = _round_up(H, 128)
    dH = Hp - H

    ctx_p = context.astype(compute_dtype)        # bf16 stream -> half HBM bytes
    tgt_p = target.astype(f32)
    wa_t = wa_weight.T.astype(f32)               # (H, H)
    w1 = cd_weight.T[:H].astype(f32)             # multiplies cv
    w2 = cd_weight.T[H:].astype(f32)             # multiplies target
    b = cd_bias.astype(f32)
    if dH:
        ctx_p = jnp.pad(ctx_p, ((0, 0), (0, 0), (0, dH)))
        tgt_p = jnp.pad(tgt_p, ((0, 0), (0, dH)))
        wa_t = jnp.pad(wa_t, ((0, dH), (0, dH)))
        w1 = jnp.pad(w1, ((0, dH), (0, dH)))
        w2 = jnp.pad(w2, ((0, dH), (0, dH)))
        b = jnp.pad(b, (0, dH))
    cd_t = jnp.concatenate([w1, w2], axis=0)     # (2Hp, Hp)
    b_row = b[None, :]                           # (1, Hp)
    zero_row = jnp.zeros((1, Hp), f32)

    # (1) proj = target @ Wa^T : hoisted out of the seq loop entirely and done
    #     as one full-width GEMM (was recomputed once per seq tile before).
    proj = _linear(tgt_p, wa_t, zero_row, out_dtype=compute_dtype)      # (B, Hp)
    proj3 = proj[:, None, :]                                            # (B, 1, Hp)

    tb = B if B <= tb_max else tb_max            # batch rows per grid step
    nb = pl.cdiv(B, tb)

    if S <= ts_max:
        # Fast path: single seq tile, plain softmax, no scratch.
        cv3, attn3 = pl.pallas_call(
            _attn_single_kernel,
            out_shape=(jax.ShapeDtypeStruct((B, 1, Hp), f32),
                       jax.ShapeDtypeStruct((B, 1, S), f32)),
            grid_spec=pltpu.PrefetchScalarGridSpec(
                num_scalar_prefetch=0,
                grid=(nb,),
                in_specs=[
                    pl.BlockSpec((tb, S, Hp), lambda b_: (b_, 0, 0)),
                    pl.BlockSpec((tb, 1, Hp), lambda b_: (b_, 0, 0)),
                ],
                out_specs=[
                    pl.BlockSpec((tb, 1, Hp), lambda b_: (b_, 0, 0)),
                    pl.BlockSpec((tb, 1, S), lambda b_: (b_, 0, 0)),
                ],
            ),
            compiler_params=pltpu.CompilerParams(
                dimension_semantics=("parallel",),
                vmem_limit_bytes=_VMEM_LIMIT),
        )(ctx_p, proj3)
        attn = attn3[:, 0, :]
    else:
        ts = max(128, (ts_max // 128) * 128)     # lane-aligned seq tile
        ns = pl.cdiv(S, ts)
        Sp = ns * ts                             # only the attn OUTPUT is padded
        cv3, attn3 = pl.pallas_call(
            functools.partial(_attn_stream_kernel, seq_len=S, ts=ts),
            out_shape=(jax.ShapeDtypeStruct((B, 1, Hp), f32),
                       jax.ShapeDtypeStruct((B, 1, Sp), f32)),
            grid_spec=pltpu.PrefetchScalarGridSpec(
                num_scalar_prefetch=0,
                grid=(nb, ns),
                in_specs=[
                    pl.BlockSpec((tb, ts, Hp), lambda b_, s_: (b_, s_, 0)),
                    pl.BlockSpec((tb, 1, Hp), lambda b_, s_: (b_, 0, 0)),
                ],
                out_specs=[
                    pl.BlockSpec((tb, 1, Hp), lambda b_, s_: (b_, 0, 0)),
                    pl.BlockSpec((tb, 1, Sp), lambda b_, s_: (b_, 0, 0)),
                ],
                scratch_shapes=[
                    pltpu.VMEM((tb, 1, 1), f32),     # running max
                    pltpu.VMEM((tb, 1, 1), f32),     # running denom
                    pltpu.VMEM((tb, 1, Hp), f32),    # cv accumulator
                ],
            ),
            compiler_params=pltpu.CompilerParams(
                dimension_semantics=("parallel", "arbitrary"),
                vmem_limit_bytes=_VMEM_LIMIT),
        )(ctx_p, proj3)
        attn = attn3[:, 0, :S]

    cv = cv3[:, 0, :]                                                   # (B, Hp)

    # (2) combine = [cv, target] @ cd_weight^T + bias : one GEMM, moved out of
    #     the attention kernel's epilogue (frees VMEM, full-width MXU).
    combine = _linear(jnp.concatenate([cv, tgt_p], axis=1), cd_t, b_row,
                      out_dtype=f32)                                    # (B, Hp)
    return combine[:, :H], attn


# ---------------------------------------------------------------------------
# Pure-JAX reference (f32, highest precision) and self-test
# ---------------------------------------------------------------------------
def _reference(context, target, wa_weight, cd_weight, cd_bias):
    hp = jax.lax.Precision.HIGHEST
    proj = jnp.dot(target, wa_weight.T, precision=hp)
    scores = jnp.einsum('bsh,bh->bs', context, proj, precision=hp)
    attn = jax.nn.softmax(scores, axis=-1)
    cv = jnp.einsum('bs,bsh->bh', attn, context, precision=hp)
    combine = jnp.dot(jnp.concatenate([cv, target], axis=1), cd_weight.T,
                      precision=hp) + cd_bias
    return combine, attn


if __name__ == "__main__":
    def run_case(B, S, H, ts_max):
        key = jax.random.PRNGKey(0)
        k_ctx, k_tgt, k_wa, k_w, k_b = jax.random.split(key, 5)
        context = jax.random.normal(k_ctx, (B, S, H), dtype=jnp.float32)
        target = jax.random.normal(k_tgt, (B, H), dtype=jnp.float32)
        wa_weight = jax.random.normal(k_wa, (H, H), dtype=jnp.float32) * 0.1
        cd_weight = jax.random.normal(k_w, (H, 2 * H), dtype=jnp.float32) * 0.1
        cd_bias = jax.random.normal(k_b, (H,), dtype=jnp.float32) * 0.1

        combine, attn = attention_forward(context, target, wa_weight,
                                          cd_weight, cd_bias, ts_max=ts_max)
        combine, attn = jax.block_until_ready((combine, attn))

        ref_combine, ref_attn = _reference(context, target, wa_weight,
                                           cd_weight, cd_bias)
        assert combine.shape == (B, H) and attn.shape == (B, S)
        # Exact-reciprocal normalization -> rows sum to 1 at f32 accuracy.
        assert jnp.allclose(attn.sum(-1), 1.0, atol=1e-4)
        # bf16 context + single-pass MXU (DEFAULT precision) -> loosened tol.
        assert jnp.allclose(attn, ref_attn, atol=2e-2, rtol=2e-2), \
            f"attn mismatch: {jnp.max(jnp.abs(attn - ref_attn))}"
        assert jnp.allclose(combine, ref_combine, atol=2e-2, rtol=2e-2), \
            f"combine mismatch: {jnp.max(jnp.abs(combine - ref_combine))}"

    # Fast path (single seq tile) -- the typical decoder-step shape.
    run_case(B=2, S=8, H=32, ts_max=512)
    # Streaming online-softmax path with a ragged last seq tile.
    run_case(B=2, S=300, H=32, ts_max=128)

    print("KERNEL_OK")
</pallas_src>

<mosaic_0001>
module attributes {stable_mosaic.version = 11 : i64} {
  func.func @_linear_kernel(%arg0: i32, %arg1: memref<2x128xf32, #tpu.memory_space<vmem>>, %arg2: memref<128x128xf32, #tpu.memory_space<vmem>>, %arg3: memref<1x128xf32, #tpu.memory_space<vmem>>, %arg4: memref<2x128xbf16, #tpu.memory_space<vmem>>) attributes {dimension_semantics = [#tpu.dimension_semantics<parallel>], iteration_bounds = array<i64: 1>, scalar_prefetch = 0 : i64, scratch_operands = 0 : i64, tpu.core_type = #tpu.core_type<tc>, window_params = [{transform_indices = @transform_0, window_bounds = array<i64: 2, 128>}, {pipeline_mode = #tpu.pipeline_mode<synchronous>, transform_indices = @transform_1, window_bounds = array<i64: 128, 128>}, {pipeline_mode = #tpu.pipeline_mode<synchronous>, transform_indices = @transform_2, window_bounds = array<i64: 1, 128>}, {transform_indices = @transform_3, window_bounds = array<i64: 2, 128>}]} {
    %c0 = arith.constant 0 : index
    %c0_0 = arith.constant 0 : index
    %0 = vector.load %arg1[%c0, %c0_0] : memref<2x128xf32, #tpu.memory_space<vmem>>, vector<2x128xf32>
    %c0_1 = arith.constant 0 : index
    %c0_2 = arith.constant 0 : index
    %1 = vector.load %arg2[%c0_1, %c0_2] : memref<128x128xf32, #tpu.memory_space<vmem>>, vector<128x128xf32>
    %cst = arith.constant dense<0.000000e+00> : vector<2x128xf32>
    %2 = tpu.matmul %0, %1, %cst {dimension_numbers = #tpu.dot_dimension_numbers<[1], [0], [0], [1], [0, 0, 1, 1], [], []>} : vector<2x128xf32>, vector<128x128xf32>, vector<2x128xf32> -> vector<2x128xf32>
    %c0_3 = arith.constant 0 : index
    %c0_4 = arith.constant 0 : index
    %3 = vector.load %arg3[%c0_3, %c0_4] : memref<1x128xf32, #tpu.memory_space<vmem>>, vector<1x128xf32>
    %4 = vector.broadcast %3 : vector<1x128xf32> to vector<2x128xf32>
    %5 = arith.addf %2, %4 : vector<2x128xf32>
    %6 = arith.truncf %5 : vector<2x128xf32> to vector<2x128xbf16>
    %c0_5 = arith.constant 0 : index
    %c0_6 = arith.constant 0 : index
    %7 = vector.load %arg4[%c0_5, %c0_6] : memref<2x128xbf16, #tpu.memory_space<vmem>>, vector<2x128xbf16>
    tpu.vector_store %arg4[%c0_5, %c0_6], %6 {strides = array<i32>} : memref<2x128xbf16, #tpu.memory_space<vmem>>, vector<2x128xbf16>,
    return
  }
  func.func @transform_0(%arg0: i32) -> (i32, i32) {
    %c0_i32 = arith.constant 0 : i32
    %c0_i32_0 = arith.constant 0 : i32
    return %arg0, %c0_i32 : i32, i32
  }
  func.func @transform_1(%arg0: i32) -> (i32, i32) {
    %c0_i32 = arith.constant 0 : i32
    %c0_i32_0 = arith.constant 0 : i32
    %c0_i32_1 = arith.constant 0 : i32
    return %c0_i32, %c0_i32_0 : i32, i32
  }
  func.func @transform_2(%arg0: i32) -> (i32, i32) {
    %c0_i32 = arith.constant 0 : i32
    %c0_i32_0 = arith.constant 0 : i32
    %c0_i32_1 = arith.constant 0 : i32
    return %c0_i32, %c0_i32_0 : i32, i32
  }
  func.func @transform_3(%arg0: i32) -> (i32, i32) {
    %c0_i32 = arith.constant 0 : i32
    %c0_i32_0 = arith.constant 0 : i32
    return %arg0, %c0_i32 : i32, i32
  }
}

</mosaic_0001>

<llo_original>
// kernel: tpu_custom_call.1
$region0: #{tpu_custom_call.1}
  #allocation0 [shape = 'u32[]', space=smem, size = 0x4, offset = 0x4, fixed_abs, tag = 'smem constant byte address 0x4 - core index']
  #allocation1 [shape = 'u32[144,128]{1,0:T(1,128)}', space=vmem, size = 0x12000, scoped, tag = 'internal scratch']
  %s0 = inlined_call_operand.hbm [shape: f32[2,128], index: 0, kind: input, shape index: {}]
  %s1 = inlined_call_operand.hbm [shape: f32[128,128], index: 1, kind: input, shape index: {}]
  %s2 = inlined_call_operand.vmem [shape: f32[1,128], index: 2, kind: input, shape index: {}]
  %s3 = inlined_call_operand.hbm [shape: bf16[2,128], index: 3, kind: output, shape index: {}]
  %s4 = sld [smem:[#allocation0]]
  $region30: #{tpu_custom_call.1} parent=0
    _
  %s6 = ssub.s32 1, %s4
  %s7 = scalar_select 0, %s6, %s4
  $region1: #{tpu_custom_call.1} parent=0
    #allocation2 [shape = 'u8[1024]{0}', space=vmem, size = 0x400, scoped, tag = 'input window, operand 0, single buffered']
    #allocation3 [shape = 's32[1]{0}', space=sflag, size = 0x4, scoped, tag = 'scoped memory for tpu_custom_call.1']
    #allocation4 [shape = 's32[1]{0}', space=sflag, size = 0x4, scoped, tag = 'scoped memory for tpu_custom_call.1']
    #allocation5 [shape = 'u8[65536]{0}', space=vmem, size = 0x10000, scoped, tag = 'input window, operand 1, single buffered']
    #allocation6 [shape = 's32[1]{0}', space=sflag, size = 0x4, scoped, tag = 'scoped memory for tpu_custom_call.1']
    #allocation7 [shape = 'u8[512]{0}', space=vmem, size = 0x400, scoped, tag = 'output window, operand 0, single buffered']
    %8 = vsyncpa [#allocation3], 0
    %9 = vsyncpa [#allocation6], 0
    %10 = vsyncpa [#allocation4], 0
    // Predicated region
    $region2: #{tpu_custom_call.1} parent=1 // pred_check
      _
    $region3: #{tpu_custom_call.1} parent=1 // pred_check_branch
      %12 = sbr.rel (0) target = $region5
    $region4: #{tpu_custom_call.1} parent=1 // pred_region
      %s14 = ssub.s32 32, 32
      %15 = vsyncadd [#allocation3], %s14
      %s17 = sshll.u32 [#allocation2], 4
      %s18 = int_to_ptr.vmem [resolvable:$true] %s17
      %20 = dma.hbm_to_vmem [thread:$0]  %s0, 32, %s18, [#allocation3]
    $region5: #{tpu_custom_call.1} parent=1 // pred_fallthru
      _
    // Predicated region
    $region6: #{tpu_custom_call.1} parent=1 // pred_check
      _
    $region7: #{tpu_custom_call.1} parent=1 // pred_check_branch
      %22 = sbr.rel (0) target = $region9
    $region8: #{tpu_custom_call.1} parent=1 // pred_region
      %s24 = ssub.s32 2048, 2048
      %25 = vsyncadd [#allocation6], %s24
      %s26 = sshll.u32 [#allocation5], 4
      %s27 = int_to_ptr.vmem [resolvable:$true] %s26
      %32 = dma.hbm_to_vmem [thread:$0]  %s1, 2048, %s27, [#allocation6], 128, 128, 8
    $region9: #{tpu_custom_call.1} parent=1 // pred_fallthru
      _
    // Predicated region
    $region10: #{tpu_custom_call.1} parent=1 // pred_check
      _
    $region11: #{tpu_custom_call.1} parent=1 // pred_check_branch
      %34 = sbr.rel (0) target = $region13
    $region12: #{tpu_custom_call.1} parent=1 // pred_region
      _
    $region13: #{tpu_custom_call.1} parent=1 // pred_fallthru
      _
    // Predicated region
    $region14: #{tpu_custom_call.1} parent=1 // pred_check
      _
    $region15: #{tpu_custom_call.1} parent=1 // pred_check_branch
      %36 = sbr.rel (0) target = $region17
    $region16: #{tpu_custom_call.1} parent=1 // pred_region
      %37 = dma.done [#allocation3], 32
    $region17: #{tpu_custom_call.1} parent=1 // pred_fallthru
      _
    // Predicated region
    $region18: #{tpu_custom_call.1} parent=1 // pred_check
      _
    $region19: #{tpu_custom_call.1} parent=1 // pred_check_branch
      %39 = sbr.rel (0) target = $region21
    $region20: #{tpu_custom_call.1} parent=1 // pred_region
      %40 = dma.done [#allocation6], 2048
    $region21: #{tpu_custom_call.1} parent=1 // pred_fallthru
      _
    %v41 = vld [vmem:[#allocation2] sm:$0x3]
    %v42 = vld [vmem:[#allocation5] sm:$0xff]
    %v43 = vld [vmem:[#allocation5 + $0x8] sm:$0xff]
    %v44 = vld [vmem:[#allocation5 + $0x10] sm:$0xff]
    %v45 = vld [vmem:[#allocation5 + $0x18] sm:$0xff]
    %v46 = vld [vmem:[#allocation5 + $0x20] sm:$0xff]
    %v47 = vld [vmem:[#allocation5 + $0x28] sm:$0xff]
    %v48 = vld [vmem:[#allocation5 + $0x30] sm:$0xff]
    %v49 = vld [vmem:[#allocation5 + $0x38] sm:$0xff]
    %v50 = vld [vmem:[#allocation5 + $0x40] sm:$0xff]
    %v51 = vld [vmem:[#allocation5 + $0x48] sm:$0xff]
    %v52 = vld [vmem:[#allocation5 + $0x50] sm:$0xff]
    %v53 = vld [vmem:[#allocation5 + $0x58] sm:$0xff]
    %v54 = vld [vmem:[#allocation5 + $0x60] sm:$0xff]
    %v55 = vld [vmem:[#allocation5 + $0x68] sm:$0xff]
    %v56 = vld [vmem:[#allocation5 + $0x70] sm:$0xff]
    %v57 = vld [vmem:[#allocation5 + $0x78] sm:$0xff]
    %v58 = vld [vmem:[%s2] sm:$0x1]
    %v60 = vlaneseq
    %v61 = vshrl.u32 %v60, 7
    %v62 = vsub.s32 0, %v61
    %v63 = vrot.slane %v58, %v62
    %65 = vmatprep.subr.mxu0 0.0
    %66 = vmatpush1.msra.mxu0 %v42
    %67 = vmatprep.subr.mxu0 0.0
    %68 = vmatpush1.msra.mxu0 %v43
    %69 = vmatprep.subr.mxu0 0.0
    %70 = vmatpush1.msra.mxu0 %v44
    %71 = vmatprep.subr.mxu0 0.0
    %72 = vmatpush1.msra.mxu0 %v45
    %73 = vmatprep.subr.mxu0 0.0
    %74 = vmatpush1.msra.mxu0 %v46
    %75 = vmatprep.subr.mxu0 0.0
    %76 = vmatpush1.msra.mxu0 %v47
    %77 = vmatprep.subr.mxu0 0.0
    %78 = vmatpush1.msra.mxu0 %v48
    %79 = vmatprep.subr.mxu0 0.0
    %80 = vmatpush1.msra.mxu0 %v49
    %81 = vmatprep.subr.mxu0 0.0
    %82 = vmatpush1.msra.mxu0 %v50
    %83 = vmatprep.subr.mxu0 0.0
    %84 = vmatpush1.msra.mxu0 %v51
    %85 = vmatprep.subr.mxu0 0.0
    %86 = vmatpush1.msra.mxu0 %v52
    %87 = vmatprep.subr.mxu0 0.0
    %88 = vmatpush1.msra.mxu0 %v53
    %89 = vmatprep.subr.mxu0 0.0
    %90 = vmatpush1.msra.mxu0 %v54
    %91 = vmatprep.subr.mxu0 0.0
    %92 = vmatpush1.msra.mxu0 %v55
    %93 = vmatprep.subr.mxu0 0.0
    %94 = vmatpush1.msra.mxu0 %v56
    %95 = vmatprep.subr.mxu0 0.0
    %96 = vmatpush1.msra.mxu0 %v57
    %97 = vmatprep.subr.mxu0 0.0
    %98 = vmatpush1.msra.mxu0 0.0
    %99 = vmatprep.subr.mxu0 0.0
    %100 = vmatpush1.msra.mxu0 0.0
    %101 = vmatprep.subr.mxu0 0.0
    %102 = vmatpush1.msra.mxu0 0.0
    %103 = vmatprep.subr.mxu0 0.0
    %104 = vmatpush1.msra.mxu0 0.0
    %105 = vmatprep.subr.mxu0 0.0
    %106 = vmatpush1.msra.mxu0 0.0
    %107 = vmatprep.subr.mxu0 0.0
    %108 = vmatpush1.msra.mxu0 0.0
    %109 = vmatprep.subr.mxu0 0.0
    %110 = vmatpush1.msra.mxu0 0.0
    %111 = vmatprep.subr.mxu0 0.0
    %112 = vmatpush1.msra.mxu0 0.0
    %113 = vmatprep.subr.mxu0 0.0
    %114 = vmatpush1.msra.mxu0 0.0
    %115 = vmatprep.subr.mxu0 0.0
    %116 = vmatpush1.msra.mxu0 0.0
    %117 = vmatprep.subr.mxu0 0.0
    %118 = vmatpush1.msra.mxu0 0.0
    %119 = vmatprep.subr.mxu0 0.0
    %120 = vmatpush1.msra.mxu0 0.0
    %121 = vmatprep.subr.mxu0 0.0
    %122 = vmatpush1.msra.mxu0 0.0
    %123 = vmatprep.subr.mxu0 0.0
    %124 = vmatpush1.msra.mxu0 0.0
    %125 = vmatprep.subr.mxu0 0.0
    %126 = vmatpush1.msra.mxu0 0.0
    %127 = vmatprep.subr.mxu0 0.0
    %128 = vmatpush1.msra.mxu0 0.0
    %129 = vmatprep.mubr.f32.mxu0 0.0
    %130 = vmatmul.mubr.f32.gmra.mrb[0].mxu0 %v41
    %v131 = vpop.f32.mrb[0].mxu0
    %v132 = vadd.f32 %v63, %v131
    %v133 = vpop.f32.mrb[0].mxu0
    %134 = vdwg.mxu0
    %v135 = vpack.c.bf16 %v132, %v132
    %136 = vst [vmem:[#allocation7] sm:$0x1] %v135
    // Predicated region
    $region22: #{tpu_custom_call.1} parent=1 // pred_check
      _
    $region23: #{tpu_custom_call.1} parent=1 // pred_check_branch
      %138 = sbr.rel (0) target = $region25
    $region24: #{tpu_custom_call.1} parent=1 // pred_region
      %s140 = ssub.s32 16, 16
      %141 = vsyncadd [#allocation4], %s140
      %s143 = sshll.u32 [#allocation7], 4
      %s144 = int_to_ptr.vmem [resolvable:$true] %s143
      %146 = dma.vmem_to_hbm [thread:$0]  %s144, 16, %s3, [#allocation4]
    $region25: #{tpu_custom_call.1} parent=1 // pred_fallthru
      _
    // Predicated region
    $region26: #{tpu_custom_call.1} parent=1 // pred_check
      _
    $region27: #{tpu_custom_call.1} parent=1 // pred_check_branch
      %148 = sbr.rel (0) target = $region29
    $region28: #{tpu_custom_call.1} parent=1 // pred_region
      %149 = dma.done [#allocation4], 16
    $region29: #{tpu_custom_call.1} parent=1 // pred_fallthru
      _
    %150 = vsyncpa [#allocation3], 1
    %151 = vsyncpa [#allocation6], 1
    %152 = vsyncpa [#allocation4], 1

</llo_original>
